<compile_context>
chip_gen: v7x
topology: tpu7x:2x2x1
jax: 0.10.0
libtpu: 0.0.40
codegen_flags: <defaults>
</compile_context>

<pallas_src>
import functools

import jax
import jax.numpy as jnp
from jax import lax
from jax.experimental import pallas as pl
from jax.experimental.pallas import tpu as pltpu

# dot_general dimension numbers for "A @ B^T" (contract last dim of both).
_TRANS_B = (((1,), (1,)), ((), ()))


def _round_up(x, m):
    return (x + m - 1) // m * m


def _cdiv(a, b):
    return -(-a // b)


def _padded_vmem_bytes(shape, dtype, buffers=2):
    """Rough Mosaic VMEM footprint of one block: lane dim pads to 128,
    sublane dim pads to the native tile (8 rows f32 / 16 rows bf16),
    times the pipeline buffer count (default double-buffered)."""
    itemsize = jnp.dtype(dtype).itemsize
    sub = max(1, 32 // itemsize)
    if len(shape) == 1:
        rows, cols = 1, shape[0]
    else:
        rows, cols = shape[-2], shape[-1]
    lead = 1
    for d in shape[:-2]:
        lead *= d
    return lead * _round_up(rows, sub) * _round_up(cols, 128) * itemsize * buffers


def q_model_kernel(state_ref, action_ref, w1t_ref, b1t_ref, w2t_ref, b2t_ref,
                   eye_ref, out_ref, *, act_dim):
    # ---- layer 1 (both heads fused), batch-on-lanes --------------------
    # (2H, S) x (tb, S)^T -> (2H, tb); f32 MXU accumulation.
    h = lax.dot_general(w1t_ref[...], state_ref[...], _TRANS_B,
                        preferred_element_type=jnp.float32)
    h = jnp.maximum(h + b1t_ref[...], 0.0)                 # (2H, tb), dense f32

    # ---- layer 2 (block-diagonal packed heads) --------------------------
    # (A+1, 2H) x (2H, tb) -> (A+1, tb); stays f32 (tiny, accuracy-critical).
    z = jnp.dot(w2t_ref[...], h, preferred_element_type=jnp.float32)
    z = z + b2t_ref[...]                                    # (A+1, tb)

    mu = jnp.tanh(z[:act_dim, :])                           # (A, tb): lane-dense EUP
    v = z[act_dim:act_dim + 1, :]                           # (1, tb)

    # action^T via a tiny identity matmul (exact; avoids a narrow XLU
    # sublane<->lane transpose of the (tb, A) tile).
    a_t = lax.dot_general(eye_ref[...], action_ref[...], _TRANS_B,
                          preferred_element_type=jnp.float32)   # (A, tb)

    diff = a_t - mu                                         # (A, tb), f32
    adv = -0.5 * jnp.sum(diff * diff, axis=0, keepdims=True)  # (1, tb): A-row add
    out_ref[...] = adv + v                                  # lane-dense (1, tb) store


def q_model_forward(state, action, params, *, block_batch=8192,
                    compute_dtype=jnp.bfloat16):
    """Fused NAF Q(s, a) forward. Returns (B, 1) float32.

    block_batch: rows per grid step.  Default 8192 fits comfortably in v7x's
    64 MiB VMEM; on v6e (128 MiB physical) it can be raised to 16-32K rows.
    compute_dtype: dtype for the streamed state + packed W1 (MXU path).
    Action, biases, W2 and all elementwise math stay float32.
    """
    B, S = state.shape
    A = action.shape[1]
    H = params["w1m"].shape[1]

    # ---- wrapper-side weight packing (tiny, done once) -------------------
    w1t = jnp.concatenate([params["w1m"], params["w1v"]], axis=1).T     # (2H, S)
    b1t = jnp.concatenate([params["b1m"], params["b1v"]], axis=1).T     # (2H, 1)
    w2t = jnp.zeros((A + 1, 2 * H), jnp.float32)
    w2t = w2t.at[:A, :H].set(params["w2m"].T)
    w2t = w2t.at[A:, H:].set(params["w2v"].T)                           # (A+1, 2H)
    b2t = jnp.concatenate([params["b2m"], params["b2v"]], axis=1).T     # (A+1, 1)
    eye_a = jnp.eye(A, dtype=jnp.float32)                               # (A, A)

    action = action.astype(jnp.float32)      # keep advantage math exact in f32
    if compute_dtype is not None:
        # Best when the producer already emits bf16 (cast fuses upstream);
        # also halves the streamed-block VMEM, which buys a larger tile.
        state = state.astype(compute_dtype)
        w1t = w1t.astype(compute_dtype)

    # ---- batch tiling -----------------------------------------------------
    tb = _round_up(max(1, min(block_batch, B)), 8)
    # v7x megacore: make the batch grid span both TensorCores once there is
    # enough work that one extra grid step is free on single-TC chips too.
    if B >= 1024 and _cdiv(B, tb) < 2:
        tb = _round_up(_cdiv(B, 2), 128)
    if _cdiv(B, tb) > 1:
        tb = _round_up(tb, 128)              # keep lane-dense output blocks aligned
    b_pad = _round_up(B, tb)
    if b_pad != B:
        state = jnp.pad(state, ((0, b_pad - B), (0, 0)))
        action = jnp.pad(action, ((0, b_pad - B), (0, 0)))
    num_tiles = b_pad // tb

    # ---- explicit VMEM budget from the padded, double-buffered footprint --
    vmem_needed = (
        _padded_vmem_bytes((tb, S), state.dtype) +        # streamed state tile
        _padded_vmem_bytes((tb, A), jnp.float32) +        # streamed action tile
        _padded_vmem_bytes((1, tb), jnp.float32) +        # lane-dense Q row
        _padded_vmem_bytes((2 * H, S), w1t.dtype) +       # resident weights/biases
        _padded_vmem_bytes((2 * H, 1), jnp.float32) +
        _padded_vmem_bytes((A + 1, 2 * H), jnp.float32) +
        _padded_vmem_bytes((A + 1, 1), jnp.float32) +
        _padded_vmem_bytes((A, A), jnp.float32))
    # 2x + 8 MiB headroom for compute temporaries (h is (2H, tb) f32) and
    # internal scratch; capped so a huge user block_batch cannot over-request.
    vmem_limit = int(min(2 * vmem_needed + (8 << 20), 100 << 20))

    in_bytes = jnp.dtype(state.dtype).itemsize
    cost = pl.CostEstimate(
        flops=2 * b_pad * (S * 2 * H + 2 * H * (A + 1) + A * A),
        transcendentals=b_pad * A,
        bytes_accessed=(in_bytes * b_pad * S + 4 * b_pad * A + 4 * b_pad
                        + in_bytes * 2 * H * S + 4 * (A + 1) * 2 * H
                        + 4 * (2 * H + A + 1 + A * A)),
    )

    out_row = pl.pallas_call(
        functools.partial(q_model_kernel, act_dim=A),
        out_shape=jax.ShapeDtypeStruct((1, b_pad), jnp.float32),
        grid=(num_tiles,),
        in_specs=[
            pl.BlockSpec((tb, S), lambda i: (i, 0)),            # state  (streamed)
            pl.BlockSpec((tb, A), lambda i: (i, 0)),            # action (streamed, f32)
            pl.BlockSpec((2 * H, S), lambda i: (0, 0)),         # W1^T (VMEM-resident)
            pl.BlockSpec((2 * H, 1), lambda i: (0, 0)),         # b1^T
            pl.BlockSpec((A + 1, 2 * H), lambda i: (0, 0)),     # W2^T (block-diag)
            pl.BlockSpec((A + 1, 1), lambda i: (0, 0)),         # b2^T
            pl.BlockSpec((A, A), lambda i: (0, 0)),             # identity for action^T
        ],
        out_specs=pl.BlockSpec((1, tb), lambda i: (0, i)),      # lane-dense Q row
        compiler_params=pltpu.CompilerParams(
            dimension_semantics=(pltpu.PARALLEL,),
            vmem_limit_bytes=vmem_limit),
        cost_estimate=cost,
    )(state, action, w1t, b1t, w2t, b2t, eye_a)

    # Padded lanes beyond B hold garbage; always slice before any reduction.
    return out_row[0, :B].reshape(B, 1)


def init_params(key, state_dim, action_dim, hidden):
    ks = jax.random.split(key, 8)

    def lin(k, fan_in, fan_out):
        scale = 1.0 / jnp.sqrt(fan_in)
        return jax.random.uniform(k, (fan_in, fan_out), jnp.float32,
                                  minval=-scale, maxval=scale)

    return {
        "w1m": lin(ks[0], state_dim, hidden),
        "b1m": lin(ks[1], 1, hidden),
        "w2m": lin(ks[2], hidden, action_dim),
        "b2m": lin(ks[3], 1, action_dim),
        "w1v": lin(ks[4], state_dim, hidden),
        "b1v": lin(ks[5], 1, hidden),
        "w2v": lin(ks[6], hidden, 1),
        "b2v": lin(ks[7], 1, 1),
    }


def reference_forward(state, action, p):
    h_mu = jnp.maximum(state @ p["w1m"] + p["b1m"], 0.0)
    mu = jnp.tanh(h_mu @ p["w2m"] + p["b2m"])
    h_v = jnp.maximum(state @ p["w1v"] + p["b1v"], 0.0)
    v = h_v @ p["w2v"] + p["b2v"]
    diff = action - mu
    adv = -0.5 * jnp.sum(diff * diff, axis=-1, keepdims=True)
    return adv + v


if __name__ == "__main__":
    B, S, A, H = 8, 16, 4, 32
    key = jax.random.PRNGKey(0)
    k_state, k_action, k_params = jax.random.split(key, 3)

    state = jax.random.normal(k_state, (B, S), jnp.float32)
    action = jax.random.normal(k_action, (B, A), jnp.float32)
    params = init_params(k_params, S, A, H)
    ref = reference_forward(state, action, params)

    # Exact path (f32 streaming) — must match the reference tightly.
    out_f32 = jax.block_until_ready(
        q_model_forward(state, action, params, compute_dtype=None))
    assert out_f32.shape == (B, 1)
    assert jnp.allclose(out_f32, ref, atol=1e-5, rtol=1e-5)

    # Default path (bf16-streamed state/W1; action + tail math stay f32).
    out_bf16 = jax.block_until_ready(q_model_forward(state, action, params))
    assert out_bf16.shape == (B, 1)
    assert jnp.allclose(out_bf16, ref, atol=1e-1, rtol=5e-2)

    # Multi-tile / padded-batch path (3 grid steps, masked tail rows).
    B2 = 300
    k2s, k2a = jax.random.split(jax.random.PRNGKey(1))
    state2 = jax.random.normal(k2s, (B2, S), jnp.float32)
    action2 = jax.random.normal(k2a, (B2, A), jnp.float32)
    ref2 = reference_forward(state2, action2, params)
    out2 = jax.block_until_ready(
        q_model_forward(state2, action2, params, block_batch=128,
                        compute_dtype=None))
    assert out2.shape == (B2, 1)
    assert jnp.allclose(out2, ref2, atol=1e-4, rtol=1e-4)

    # Large batch: forced >=2 tiles (v7x megacore path) with the bf16 default.
    B3 = 2048
    k3s, k3a = jax.random.split(jax.random.PRNGKey(2))
    state3 = jax.random.normal(k3s, (B3, S), jnp.float32)
    action3 = jax.random.normal(k3a, (B3, A), jnp.float32)
    ref3 = reference_forward(state3, action3, params)
    out3 = jax.block_until_ready(q_model_forward(state3, action3, params))
    assert out3.shape == (B3, 1)
    assert jnp.allclose(out3, ref3, atol=1e-1, rtol=5e-2)

    print("KERNEL_OK")
</pallas_src>

<mosaic_0001>
module attributes {stable_mosaic.version = 11 : i64} {
  func.func @q_model_kernel(%arg0: i32, %arg1: memref<8x16xf32, #tpu.memory_space<vmem>>, %arg2: memref<8x4xf32, #tpu.memory_space<vmem>>, %arg3: memref<64x16xf32, #tpu.memory_space<vmem>>, %arg4: memref<64x1xf32, #tpu.memory_space<vmem>>, %arg5: memref<5x64xf32, #tpu.memory_space<vmem>>, %arg6: memref<5x1xf32, #tpu.memory_space<vmem>>, %arg7: memref<4x4xf32, #tpu.memory_space<vmem>>, %arg8: memref<1x8xf32, #tpu.memory_space<vmem>>) attributes {dimension_semantics = [#tpu.dimension_semantics<parallel>], iteration_bounds = array<i64: 1>, scalar_prefetch = 0 : i64, scratch_operands = 0 : i64, tpu.core_type = #tpu.core_type<tc>, window_params = [{transform_indices = @transform_0, window_bounds = array<i64: 8, 16>}, {transform_indices = @transform_1, window_bounds = array<i64: 8, 4>}, {pipeline_mode = #tpu.pipeline_mode<synchronous>, transform_indices = @transform_2, window_bounds = array<i64: 64, 16>}, {pipeline_mode = #tpu.pipeline_mode<synchronous>, transform_indices = @transform_3, window_bounds = array<i64: 64, 1>}, {pipeline_mode = #tpu.pipeline_mode<synchronous>, transform_indices = @transform_4, window_bounds = array<i64: 5, 64>}, {pipeline_mode = #tpu.pipeline_mode<synchronous>, transform_indices = @transform_5, window_bounds = array<i64: 5, 1>}, {pipeline_mode = #tpu.pipeline_mode<synchronous>, transform_indices = @transform_6, window_bounds = array<i64: 4, 4>}, {transform_indices = @transform_7, window_bounds = array<i64: 1, 8>}]} {
    %c0 = arith.constant 0 : index
    %c0_0 = arith.constant 0 : index
    %0 = vector.load %arg3[%c0, %c0_0] : memref<64x16xf32, #tpu.memory_space<vmem>>, vector<64x16xf32>
    %c0_1 = arith.constant 0 : index
    %c0_2 = arith.constant 0 : index
    %1 = vector.load %arg1[%c0_1, %c0_2] : memref<8x16xf32, #tpu.memory_space<vmem>>, vector<8x16xf32>
    %cst = arith.constant dense<0.000000e+00> : vector<64x8xf32>
    %2 = tpu.matmul %0, %1, %cst {dimension_numbers = #tpu.dot_dimension_numbers<[1], [1], [0], [0], [0, 0, 1, 0], [], []>} : vector<64x16xf32>, vector<8x16xf32>, vector<64x8xf32> -> vector<64x8xf32>
    %c0_3 = arith.constant 0 : index
    %c0_4 = arith.constant 0 : index
    %3 = vector.load %arg4[%c0_3, %c0_4] : memref<64x1xf32, #tpu.memory_space<vmem>>, vector<64x1xf32>
    %4 = vector.broadcast %3 : vector<64x1xf32> to vector<64x8xf32>
    %5 = arith.addf %2, %4 : vector<64x8xf32>
    %cst_5 = arith.constant 0.000000e+00 : f32
    %6 = vector.broadcast %cst_5 : f32 to vector<64x8xf32>
    %7 = arith.maximumf %5, %6 : vector<64x8xf32>
    %c0_6 = arith.constant 0 : index
    %c0_7 = arith.constant 0 : index
    %8 = vector.load %arg5[%c0_6, %c0_7] : memref<5x64xf32, #tpu.memory_space<vmem>>, vector<5x64xf32>
    %cst_8 = arith.constant dense<0.000000e+00> : vector<5x8xf32>
    %9 = tpu.matmul %8, %7, %cst_8 {dimension_numbers = #tpu.dot_dimension_numbers<[1], [0], [0], [1], [0, 0, 1, 1], [], []>} : vector<5x64xf32>, vector<64x8xf32>, vector<5x8xf32> -> vector<5x8xf32>
    %c0_9 = arith.constant 0 : index
    %c0_10 = arith.constant 0 : index
    %10 = vector.load %arg6[%c0_9, %c0_10] : memref<5x1xf32, #tpu.memory_space<vmem>>, vector<5x1xf32>
    %11 = vector.broadcast %10 : vector<5x1xf32> to vector<5x8xf32>
    %12 = arith.addf %9, %11 : vector<5x8xf32>
    %13 = vector.extract_strided_slice %12 {offsets = [0, 0], sizes = [4, 8], strides = [1, 1]} : vector<5x8xf32> to vector<4x8xf32>
    %14 = math.tanh %13 : vector<4x8xf32>
    %15 = vector.extract_strided_slice %12 {offsets = [4, 0], sizes = [1, 8], strides = [1, 1]} : vector<5x8xf32> to vector<1x8xf32>
    %c0_11 = arith.constant 0 : index
    %c0_12 = arith.constant 0 : index
    %16 = vector.load %arg7[%c0_11, %c0_12] : memref<4x4xf32, #tpu.memory_space<vmem>>, vector<4x4xf32>
    %c0_13 = arith.constant 0 : index
    %c0_14 = arith.constant 0 : index
    %17 = vector.load %arg2[%c0_13, %c0_14] : memref<8x4xf32, #tpu.memory_space<vmem>>, vector<8x4xf32>
    %cst_15 = arith.constant dense<0.000000e+00> : vector<4x8xf32>
    %18 = tpu.matmul %16, %17, %cst_15 {dimension_numbers = #tpu.dot_dimension_numbers<[1], [1], [0], [0], [0, 0, 1, 0], [], []>} : vector<4x4xf32>, vector<8x4xf32>, vector<4x8xf32> -> vector<4x8xf32>
    %19 = arith.subf %18, %14 : vector<4x8xf32>
    %20 = arith.mulf %19, %19 : vector<4x8xf32>
    %cst_16 = arith.constant dense<0.000000e+00> : vector<8xf32>
    %21 = vector.multi_reduction <add>, %20, %cst_16 [0] : vector<4x8xf32> to vector<8xf32>
    %22 = vector.shape_cast %21 : vector<8xf32> to vector<1x8xf32>
    %cst_17 = arith.constant -5.000000e-01 : f32
    %23 = vector.broadcast %cst_17 : f32 to vector<1x8xf32>
    %24 = arith.mulf %23, %22 : vector<1x8xf32>
    %25 = arith.addf %24, %15 : vector<1x8xf32>
    %c0_18 = arith.constant 0 : index
    %c0_19 = arith.constant 0 : index
    %26 = vector.load %arg8[%c0_18, %c0_19] : memref<1x8xf32, #tpu.memory_space<vmem>>, vector<1x8xf32>
    tpu.vector_store %arg8[%c0_18, %c0_19], %25 {strides = array<i32>} : memref<1x8xf32, #tpu.memory_space<vmem>>, vector<1x8xf32>,
    return
  }
  func.func @transform_0(%arg0: i32) -> (i32, i32) {
    %c0_i32 = arith.constant 0 : i32
    %c0_i32_0 = arith.constant 0 : i32
    return %arg0, %c0_i32 : i32, i32
  }
  func.func @transform_1(%arg0: i32) -> (i32, i32) {
    %c0_i32 = arith.constant 0 : i32
    %c0_i32_0 = arith.constant 0 : i32
    return %arg0, %c0_i32 : i32, i32
  }
  func.func @transform_2(%arg0: i32) -> (i32, i32) {
    %c0_i32 = arith.constant 0 : i32
    %c0_i32_0 = arith.constant 0 : i32
    %c0_i32_1 = arith.constant 0 : i32
    return %c0_i32, %c0_i32_0 : i32, i32
  }
  func.func @transform_3(%arg0: i32) -> (i32, i32) {
    %c0_i32 = arith.constant 0 : i32
    %c0_i32_0 = arith.constant 0 : i32
    %c0_i32_1 = arith.constant 0 : i32
    return %c0_i32, %c0_i32_0 : i32, i32
  }
  func.func @transform_4(%arg0: i32) -> (i32, i32) {
    %c0_i32 = arith.constant 0 : i32
    %c0_i32_0 = arith.constant 0 : i32
    %c0_i32_1 = arith.constant 0 : i32
    return %c0_i32, %c0_i32_0 : i32, i32
  }
  func.func @transform_5(%arg0: i32) -> (i32, i32) {
    %c0_i32 = arith.constant 0 : i32
    %c0_i32_0 = arith.constant 0 : i32
    %c0_i32_1 = arith.constant 0 : i32
    return %c0_i32, %c0_i32_0 : i32, i32
  }
  func.func @transform_6(%arg0: i32) -> (i32, i32) {
    %c0_i32 = arith.constant 0 : i32
    %c0_i32_0 = arith.constant 0 : i32
    %c0_i32_1 = arith.constant 0 : i32
    return %c0_i32, %c0_i32_0 : i32, i32
  }
  func.func @transform_7(%arg0: i32) -> (i32, i32) {
    %c0_i32 = arith.constant 0 : i32
    %c0_i32_0 = arith.constant 0 : i32
    return %c0_i32, %arg0 : i32, i32
  }
}

</mosaic_0001>

<llo_original>
// kernel: tpu_custom_call.1
$region0: #{tpu_custom_call.1}
  #allocation0 [shape = 'u32[]', space=smem, size = 0x4, offset = 0x4, fixed_abs, tag = 'smem constant byte address 0x4 - core index']
  #allocation1 [shape = 'u32[144,128]{1,0:T(1,128)}', space=vmem, size = 0x12000, scoped, tag = 'internal scratch']
  %s0 = inlined_call_operand.vmem [shape: f32[8,16], index: 0, kind: input, shape index: {}]
  %s1 = inlined_call_operand.vmem [shape: f32[8,4], index: 1, kind: input, shape index: {}]
  %s2 = inlined_call_operand.vmem [shape: f32[64,16], index: 2, kind: input, shape index: {}]
  %s3 = inlined_call_operand.vmem [shape: f32[64,1], index: 3, kind: input, shape index: {}]
  %s4 = inlined_call_operand.vmem [shape: f32[5,64], index: 4, kind: input, shape index: {}]
  %s5 = inlined_call_operand.vmem [shape: f32[5,1], index: 5, kind: input, shape index: {}]
  %s6 = inlined_call_operand.vmem [shape: f32[4,4], index: 6, kind: input, shape index: {}]
  %s7 = inlined_call_operand.hbm [shape: f32[1,8], index: 7, kind: output, shape index: {}]
  %s8 = sld [smem:[#allocation0]]
  $region38: #{tpu_custom_call.1} parent=0
    _
  %s10 = ssub.s32 1, %s8
  %s11 = scalar_select 0, %s10, %s8
  $region1: #{tpu_custom_call.1} parent=0
    #allocation2 [shape = 'u8[512]{0}', space=vmem, size = 0x400, scoped, tag = 'output window, operand 0, single buffered']
    #allocation3 [shape = 's32[1]{0}', space=sflag, size = 0x4, scoped, tag = 'scoped memory for tpu_custom_call.1']
    %12 = vsyncpa [#allocation3], 0
    // Predicated region
    $region2: #{tpu_custom_call.1} parent=1 // pred_check
      _
    $region3: #{tpu_custom_call.1} parent=1 // pred_check_branch
      %14 = sbr.rel (0) target = $region5
    $region4: #{tpu_custom_call.1} parent=1 // pred_region
      _
    $region5: #{tpu_custom_call.1} parent=1 // pred_fallthru
      _
    // Predicated region
    $region6: #{tpu_custom_call.1} parent=1 // pred_check
      _
    $region7: #{tpu_custom_call.1} parent=1 // pred_check_branch
      %16 = sbr.rel (0) target = $region9
    $region8: #{tpu_custom_call.1} parent=1 // pred_region
      _
    $region9: #{tpu_custom_call.1} parent=1 // pred_fallthru
      _
    // Predicated region
    $region10: #{tpu_custom_call.1} parent=1 // pred_check
      _
    $region11: #{tpu_custom_call.1} parent=1 // pred_check_branch
      %18 = sbr.rel (0) target = $region13
    $region12: #{tpu_custom_call.1} parent=1 // pred_region
      _
    $region13: #{tpu_custom_call.1} parent=1 // pred_fallthru
      _
    // Predicated region
    $region14: #{tpu_custom_call.1} parent=1 // pred_check
      _
    $region15: #{tpu_custom_call.1} parent=1 // pred_check_branch
      %20 = sbr.rel (0) target = $region17
    $region16: #{tpu_custom_call.1} parent=1 // pred_region
      _
    $region17: #{tpu_custom_call.1} parent=1 // pred_fallthru
      _
    // Predicated region
    $region18: #{tpu_custom_call.1} parent=1 // pred_check
      _
    $region19: #{tpu_custom_call.1} parent=1 // pred_check_branch
      %22 = sbr.rel (0) target = $region21
    $region20: #{tpu_custom_call.1} parent=1 // pred_region
      _
    $region21: #{tpu_custom_call.1} parent=1 // pred_fallthru
      _
    // Predicated region
    $region22: #{tpu_custom_call.1} parent=1 // pred_check
      _
    $region23: #{tpu_custom_call.1} parent=1 // pred_check_branch
      %24 = sbr.rel (0) target = $region25
    $region24: #{tpu_custom_call.1} parent=1 // pred_region
      _
    $region25: #{tpu_custom_call.1} parent=1 // pred_fallthru
      _
    // Predicated region
    $region26: #{tpu_custom_call.1} parent=1 // pred_check
      _
    $region27: #{tpu_custom_call.1} parent=1 // pred_check_branch
      %26 = sbr.rel (0) target = $region29
    $region28: #{tpu_custom_call.1} parent=1 // pred_region
      _
    $region29: #{tpu_custom_call.1} parent=1 // pred_fallthru
      _
    %v27 = vld [vmem:[%s2] sm:$0xff]
    %v28 = vld [vmem:[%s2 + $0x8] sm:$0xff]
    %v29 = vld [vmem:[%s2 + $0x10] sm:$0xff]
    %v30 = vld [vmem:[%s2 + $0x18] sm:$0xff]
    %v31 = vld [vmem:[%s2 + $0x20] sm:$0xff]
    %v32 = vld [vmem:[%s2 + $0x28] sm:$0xff]
    %v33 = vld [vmem:[%s2 + $0x30] sm:$0xff]
    %v34 = vld [vmem:[%s2 + $0x38] sm:$0xff]
    %v35 = vld [vmem:[%s0] sm:$0xff]
    %v36 = vld [vmem:[%s3] sm:$0xff]
    %v37 = vld [vmem:[%s3 + $0x8] sm:$0xff]
    %v38 = vld [vmem:[%s3 + $0x10] sm:$0xff]
    %v39 = vld [vmem:[%s3 + $0x18] sm:$0xff]
    %v40 = vld [vmem:[%s3 + $0x20] sm:$0xff]
    %v41 = vld [vmem:[%s3 + $0x28] sm:$0xff]
    %v42 = vld [vmem:[%s3 + $0x30] sm:$0xff]
    %v43 = vld [vmem:[%s3 + $0x38] sm:$0xff]
    %45 = vset.pattern.permute.xlu0 0
    %46 = vperm.xlu0 %45, %v36
    %v47 = vpop.permute.xlu0 %46
    %50 = vset.pattern.permute.xlu0 0
    %51 = vperm.xlu0 %50, %v37
    %v52 = vpop.permute.xlu0 %51
    %55 = vset.pattern.permute.xlu0 0
    %56 = vperm.xlu0 %55, %v38
    %v57 = vpop.permute.xlu0 %56
    %60 = vset.pattern.permute.xlu0 0
    %61 = vperm.xlu0 %60, %v39
    %v62 = vpop.permute.xlu0 %61
    %65 = vset.pattern.permute.xlu0 0
    %66 = vperm.xlu0 %65, %v40
    %v67 = vpop.permute.xlu0 %66
    %70 = vset.pattern.permute.xlu0 0
    %71 = vperm.xlu0 %70, %v41
    %v72 = vpop.permute.xlu0 %71
    %75 = vset.pattern.permute.xlu0 0
    %76 = vperm.xlu0 %75, %v42
    %v77 = vpop.permute.xlu0 %76
    %80 = vset.pattern.permute.xlu0 0
    %81 = vperm.xlu0 %80, %v43
    %v82 = vpop.permute.xlu0 %81
    %vm84 = vcmask 130048
    %v86 = vsel %vm84, %v27, 0
    %v89 = vsel %vm84, %v28, 0
    %v92 = vsel %vm84, %v29, 0
    %v95 = vsel %vm84, %v30, 0
    %v98 = vsel %vm84, %v31, 0
    %v101 = vsel %vm84, %v32, 0
    %v104 = vsel %vm84, %v33, 0
    %v107 = vsel %vm84, %v34, 0
    %v110 = vsel %vm84, %v35, 0
    %112 = vmatprep.subr.mxu0 0.0
    %113 = vmatpush1.xpose.msra.mxu0 %v110
    %114 = vmatprep.subr.mxu0 0.0
    %115 = vmatpush1.xpose.msra.mxu0 0.0
    %116 = vmatprep.subr.mxu0 0.0
    %117 = vmatpush1.xpose.msra.mxu0 0.0
    %118 = vmatprep.subr.mxu0 0.0
    %119 = vmatpush1.xpose.msra.mxu0 0.0
    %120 = vmatprep.subr.mxu0 0.0
    %121 = vmatpush1.xpose.msra.mxu0 0.0
    %122 = vmatprep.subr.mxu0 0.0
    %123 = vmatpush1.xpose.msra.mxu0 0.0
    %124 = vmatprep.subr.mxu0 0.0
    %125 = vmatpush1.xpose.msra.mxu0 0.0
    %126 = vmatprep.subr.mxu0 0.0
    %127 = vmatpush1.xpose.msra.mxu0 0.0
    %128 = vmatprep.subr.mxu0 0.0
    %129 = vmatpush1.xpose.msra.mxu0 0.0
    %130 = vmatprep.subr.mxu0 0.0
    %131 = vmatpush1.xpose.msra.mxu0 0.0
    %132 = vmatprep.subr.mxu0 0.0
    %133 = vmatpush1.xpose.msra.mxu0 0.0
    %134 = vmatprep.subr.mxu0 0.0
    %135 = vmatpush1.xpose.msra.mxu0 0.0
    %136 = vmatprep.subr.mxu0 0.0
    %137 = vmatpush1.xpose.msra.mxu0 0.0
    %138 = vmatprep.subr.mxu0 0.0
    %139 = vmatpush1.xpose.msra.mxu0 0.0
    %140 = vmatprep.subr.mxu0 0.0
    %141 = vmatpush1.xpose.msra.mxu0 0.0
    %142 = vmatprep.subr.mxu0 0.0
    %143 = vmatpush1.xpose.msra.mxu0 0.0
    %144 = vmatprep.subr.mxu0 0.0
    %145 = vmatpush1.xpose.msra.mxu0 0.0
    %146 = vmatprep.subr.mxu0 0.0
    %147 = vmatpush1.xpose.msra.mxu0 0.0
    %148 = vmatprep.subr.mxu0 0.0
    %149 = vmatpush1.xpose.msra.mxu0 0.0
    %150 = vmatprep.subr.mxu0 0.0
    %151 = vmatpush1.xpose.msra.mxu0 0.0
    %152 = vmatprep.subr.mxu0 0.0
    %153 = vmatpush1.xpose.msra.mxu0 0.0
    %154 = vmatprep.subr.mxu0 0.0
    %155 = vmatpush1.xpose.msra.mxu0 0.0
    %156 = vmatprep.subr.mxu0 0.0
    %157 = vmatpush1.xpose.msra.mxu0 0.0
    %158 = vmatprep.subr.mxu0 0.0
    %159 = vmatpush1.xpose.msra.mxu0 0.0
    %160 = vmatprep.subr.mxu0 0.0
    %161 = vmatpush1.xpose.msra.mxu0 0.0
    %162 = vmatprep.subr.mxu0 0.0
    %163 = vmatpush1.xpose.msra.mxu0 0.0
    %164 = vmatprep.subr.mxu0 0.0
    %165 = vmatpush1.xpose.msra.mxu0 0.0
    %166 = vmatprep.subr.mxu0 0.0
    %167 = vmatpush1.xpose.msra.mxu0 0.0
    %168 = vmatprep.subr.mxu0 0.0
    %169 = vmatpush1.xpose.msra.mxu0 0.0
    %170 = vmatprep.subr.mxu0 0.0
    %171 = vmatpush1.xpose.msra.mxu0 0.0
    %172 = vmatprep.subr.mxu0 0.0
    %173 = vmatpush1.xpose.msra.mxu0 0.0
    %174 = vmatprep.subr.mxu0 0.0
    %175 = vmatpush1.xpose.msra.mxu0 0.0
    %176 = vmatprep.mubr.f32.mxu0 0.0
    %177 = vmatmul.mubr.f32.gmra.mrb[0].mxu0 %v86
    %v178 = vpop.f32.mrb[0].mxu0
    %v179 = vadd.f32 %v47, %v178
    %v180 = vpop.f32.mrb[0].mxu0
    %181 = vmatprep.mubr.f32.mxu0 0.0
    %182 = vmatmul.mubr.f32.gmra.mrb[0].mxu0 %v89
    %v183 = vpop.f32.mrb[0].mxu0
    %v184 = vadd.f32 %v52, %v183
    %v185 = vpop.f32.mrb[0].mxu0
    %186 = vmatprep.mubr.f32.mxu0 0.0
    %187 = vmatmul.mubr.f32.gmra.mrb[0].mxu0 %v92
    %v188 = vpop.f32.mrb[0].mxu0
    %v189 = vadd.f32 %v57, %v188
    %v190 = vpop.f32.mrb[0].mxu0
    %191 = vmatprep.mubr.f32.mxu0 0.0
    %192 = vmatmul.mubr.f32.gmra.mrb[0].mxu0 %v95
    %v193 = vpop.f32.mrb[0].mxu0
    %v194 = vadd.f32 %v62, %v193
    %v195 = vpop.f32.mrb[0].mxu0
    %196 = vmatprep.mubr.f32.mxu0 0.0
    %197 = vmatmul.mubr.f32.gmra.mrb[0].mxu0 %v98
    %v198 = vpop.f32.mrb[0].mxu0
    %v199 = vadd.f32 %v67, %v198
    %v200 = vpop.f32.mrb[0].mxu0
    %201 = vmatprep.mubr.f32.mxu0 0.0
    %202 = vmatmul.mubr.f32.gmra.mrb[0].mxu0 %v101
    %v203 = vpop.f32.mrb[0].mxu0
    %v204 = vadd.f32 %v72, %v203
    %v205 = vpop.f32.mrb[0].mxu0
    %206 = vmatprep.mubr.f32.mxu0 0.0
    %207 = vmatmul.mubr.f32.gmra.mrb[0].mxu0 %v104
    %v208 = vpop.f32.mrb[0].mxu0
    %v209 = vadd.f32 %v77, %v208
    %v210 = vpop.f32.mrb[0].mxu0
    %211 = vmatprep.mubr.f32.mxu0 0.0
    %212 = vmatmul.mubr.f32.gmra.mrb[0].mxu0 %v107
    %v213 = vpop.f32.mrb[0].mxu0
    %v214 = vadd.f32 %v82, %v213
    %v215 = vpop.f32.mrb[0].mxu0
    %216 = vdwg.mxu0
    %v217 = vmax.f32 %v179, 0.0
    %v218 = vmax.f32 %v184, 0.0
    %v219 = vmax.f32 %v189, 0.0
    %v220 = vmax.f32 %v194, 0.0
    %v221 = vmax.f32 %v199, 0.0
    %v222 = vmax.f32 %v204, 0.0
    %v223 = vmax.f32 %v209, 0.0
    %v224 = vmax.f32 %v214, 0.0
    %v225 = vld [vmem:[%s4] sm:$0x1f]
    %v226 = vld [vmem:[%s5] sm:$0x1f]
    %228 = vset.pattern.permute.xlu0 0
    %229 = vperm.xlu0 %228, %v226
    %v230 = vpop.permute.xlu0 %229
    %vm232 = vcmask 523264
    %v234 = vsel %vm232, %v225, 0
    %236 = vmatprep.subr.mxu0 0.0
    %237 = vmatpush1.msra.mxu0 %v217
    %238 = vmatprep.subr.mxu0 0.0
    %239 = vmatpush1.msra.mxu0 %v218
    %240 = vmatprep.subr.mxu0 0.0
    %241 = vmatpush1.msra.mxu0 %v219
    %242 = vmatprep.subr.mxu0 0.0
    %243 = vmatpush1.msra.mxu0 %v220
    %244 = vmatprep.subr.mxu0 0.0
    %245 = vmatpush1.msra.mxu0 %v221
    %246 = vmatprep.subr.mxu0 0.0
    %247 = vmatpush1.msra.mxu0 %v222
    %248 = vmatprep.subr.mxu0 0.0
    %249 = vmatpush1.msra.mxu0 %v223
    %250 = vmatprep.subr.mxu0 0.0
    %251 = vmatpush1.msra.mxu0 %v224
    %252 = vmatprep.subr.mxu0 0.0
    %253 = vmatpush1.msra.mxu0 0.0
    %254 = vmatprep.subr.mxu0 0.0
    %255 = vmatpush1.msra.mxu0 0.0
    %256 = vmatprep.subr.mxu0 0.0
    %257 = vmatpush1.msra.mxu0 0.0
    %258 = vmatprep.subr.mxu0 0.0
    %259 = vmatpush1.msra.mxu0 0.0
    %260 = vmatprep.subr.mxu0 0.0
    %261 = vmatpush1.msra.mxu0 0.0
    %262 = vmatprep.subr.mxu0 0.0
    %263 = vmatpush1.msra.mxu0 0.0
    %264 = vmatprep.subr.mxu0 0.0
    %265 = vmatpush1.msra.mxu0 0.0
    %266 = vmatprep.subr.mxu0 0.0
    %267 = vmatpush1.msra.mxu0 0.0
    %268 = vmatprep.subr.mxu0 0.0
    %269 = vmatpush1.msra.mxu0 0.0
    %270 = vmatprep.subr.mxu0 0.0
    %271 = vmatpush1.msra.mxu0 0.0
    %272 = vmatprep.subr.mxu0 0.0
    %273 = vmatpush1.msra.mxu0 0.0
    %274 = vmatprep.subr.mxu0 0.0
    %275 = vmatpush1.msra.mxu0 0.0
    %276 = vmatprep.subr.mxu0 0.0
    %277 = vmatpush1.msra.mxu0 0.0
    %278 = vmatprep.subr.mxu0 0.0
    %279 = vmatpush1.msra.mxu0 0.0
    %280 = vmatprep.subr.mxu0 0.0
    %281 = vmatpush1.msra.mxu0 0.0
    %282 = vmatprep.subr.mxu0 0.0
    %283 = vmatpush1.msra.mxu0 0.0
    %284 = vmatprep.subr.mxu0 0.0
    %285 = vmatpush1.msra.mxu0 0.0
    %286 = vmatprep.subr.mxu0 0.0
    %287 = vmatpush1.msra.mxu0 0.0
    %288 = vmatprep.subr.mxu0 0.0
    %289 = vmatpush1.msra.mxu0 0.0
    %290 = vmatprep.subr.mxu0 0.0
    %291 = vmatpush1.msra.mxu0 0.0
    %292 = vmatprep.subr.mxu0 0.0
    %293 = vmatpush1.msra.mxu0 0.0
    %294 = vmatprep.subr.mxu0 0.0
    %295 = vmatpush1.msra.mxu0 0.0
    %296 = vmatprep.subr.mxu0 0.0
    %297 = vmatpush1.msra.mxu0 0.0
    %298 = vmatprep.subr.mxu0 0.0
    %299 = vmatpush1.msra.mxu0 0.0
    %300 = vmatprep.mubr.f32.mxu0 0.0
    %301 = vmatmul.mubr.f32.gmra.mrb[0].mxu0 %v234
    %v302 = vpop.f32.mrb[0].mxu0
    %v303 = vadd.f32 %v230, %v302
    %v304 = vpop.f32.mrb[0].mxu0
    %305 = vdwg.mxu0
    %v306 = vtanh.pop %v303
    %v307 = vld [vmem:[%s6] sm:$0xf]
    %v308 = vld [vmem:[%s1] sm:$0xff]
    %vm309 = vcmask 31744
    %v311 = vsel %vm309, %v307, 0
    %v314 = vsel %vm309, %v308, 0
    %316 = vmatprep.subr.mxu0 0.0
    %317 = vmatpush1.xpose.msra.mxu0 %v314
    %318 = vmatprep.subr.mxu0 0.0
    %319 = vmatpush1.xpose.msra.mxu0 0.0
    %320 = vmatprep.subr.mxu0 0.0
    %321 = vmatpush1.xpose.msra.mxu0 0.0
    %322 = vmatprep.subr.mxu0 0.0
    %323 = vmatpush1.xpose.msra.mxu0 0.0
    %324 = vmatprep.subr.mxu0 0.0
    %325 = vmatpush1.xpose.msra.mxu0 0.0
    %326 = vmatprep.subr.mxu0 0.0
    %327 = vmatpush1.xpose.msra.mxu0 0.0
    %328 = vmatprep.subr.mxu0 0.0
    %329 = vmatpush1.xpose.msra.mxu0 0.0
    %330 = vmatprep.subr.mxu0 0.0
    %331 = vmatpush1.xpose.msra.mxu0 0.0
    %332 = vmatprep.subr.mxu0 0.0
    %333 = vmatpush1.xpose.msra.mxu0 0.0
    %334 = vmatprep.subr.mxu0 0.0
    %335 = vmatpush1.xpose.msra.mxu0 0.0
    %336 = vmatprep.subr.mxu0 0.0
    %337 = vmatpush1.xpose.msra.mxu0 0.0
    %338 = vmatprep.subr.mxu0 0.0
    %339 = vmatpush1.xpose.msra.mxu0 0.0
    %340 = vmatprep.subr.mxu0 0.0
    %341 = vmatpush1.xpose.msra.mxu0 0.0
    %342 = vmatprep.subr.mxu0 0.0
    %343 = vmatpush1.xpose.msra.mxu0 0.0
    %344 = vmatprep.subr.mxu0 0.0
    %345 = vmatpush1.xpose.msra.mxu0 0.0
    %346 = vmatprep.subr.mxu0 0.0
    %347 = vmatpush1.xpose.msra.mxu0 0.0
    %348 = vmatprep.subr.mxu0 0.0
    %349 = vmatpush1.xpose.msra.mxu0 0.0
    %350 = vmatprep.subr.mxu0 0.0
    %351 = vmatpush1.xpose.msra.mxu0 0.0
    %352 = vmatprep.subr.mxu0 0.0
    %353 = vmatpush1.xpose.msra.mxu0 0.0
    %354 = vmatprep.subr.mxu0 0.0
    %355 = vmatpush1.xpose.msra.mxu0 0.0
    %356 = vmatprep.subr.mxu0 0.0
    %357 = vmatpush1.xpose.msra.mxu0 0.0
    %358 = vmatprep.subr.mxu0 0.0
    %359 = vmatpush1.xpose.msra.mxu0 0.0
    %360 = vmatprep.subr.mxu0 0.0
    %361 = vmatpush1.xpose.msra.mxu0 0.0
    %362 = vmatprep.subr.mxu0 0.0
    %363 = vmatpush1.xpose.msra.mxu0 0.0
    %364 = vmatprep.subr.mxu0 0.0
    %365 = vmatpush1.xpose.msra.mxu0 0.0
    %366 = vmatprep.subr.mxu0 0.0
    %367 = vmatpush1.xpose.msra.mxu0 0.0
    %368 = vmatprep.subr.mxu0 0.0
    %369 = vmatpush1.xpose.msra.mxu0 0.0
    %370 = vmatprep.subr.mxu0 0.0
    %371 = vmatpush1.xpose.msra.mxu0 0.0
    %372 = vmatprep.subr.mxu0 0.0
    %373 = vmatpush1.xpose.msra.mxu0 0.0
    %374 = vmatprep.subr.mxu0 0.0
    %375 = vmatpush1.xpose.msra.mxu0 0.0
    %376 = vmatprep.subr.mxu0 0.0
    %377 = vmatpush1.xpose.msra.mxu0 0.0
    %378 = vmatprep.subr.mxu0 0.0
    %379 = vmatpush1.xpose.msra.mxu0 0.0
    %380 = vmatprep.mubr.f32.mxu0 0.0
    %381 = vmatmul.mubr.f32.gmra.mrb[0].mxu0 %v311
    %v382 = vpop.f32.mrb[0].mxu0
    %v383 = vadd.f32 0.0, %v382
    %v384 = vpop.f32.mrb[0].mxu0
    %385 = vdwg.mxu0
    %v386 = vsub.f32 %v383, %v306
    %v387 = vmul.f32 %v386, %v386
    %vm388 = vcmask 60416
    %v389 = vsel %vm388, %v387, 0.0
    %v390 = vrot.slane %v389, 4
    %v391 = vadd.f32 %v389, %v390
    %v392 = vrot.slane %v391, 2
    %v393 = vadd.f32 %v391, %v392
    %v394 = vrot.slane %v393, 1
    %v395 = vadd.f32 %v393, %v394
    %v396 = vmul.f32 %v395, -0.5
    %v397 = vadd.f32 %v396, %v303
    %vm398 = vcmask 61444
    %399 = vst.msk [vmem:[#allocation2 - $0x4] sm:$0x10] %vm398, %v397
    // Predicated region
    $region30: #{tpu_custom_call.1} parent=1 // pred_check
      _
    $region31: #{tpu_custom_call.1} parent=1 // pred_check_branch
      %401 = sbr.rel (0) target = $region33
    $region32: #{tpu_custom_call.1} parent=1 // pred_region
      %s403 = ssub.s32 16, 16
      %404 = vsyncadd [#allocation3], %s403
      %s406 = sshll.u32 [#allocation2], 4
      %s407 = int_to_ptr.vmem [resolvable:$true] %s406
      %409 = dma.vmem_to_hbm [thread:$0]  %s407, 16, %s7, [#allocation3]
    $region33: #{tpu_custom_call.1} parent=1 // pred_fallthru
      _
    // Predicated region
    $region34: #{tpu_custom_call.1} parent=1 // pred_check
      _
    $region35: #{tpu_custom_call.1} parent=1 // pred_check_branch
      %411 = sbr.rel (0) target = $region37
    $region36: #{tpu_custom_call.1} parent=1 // pred_region
      %412 = dma.done [#allocation3], 16
    $region37: #{tpu_custom_call.1} parent=1 // pred_fallthru
      _
    %413 = vsyncpa [#allocation3], 1

</llo_original>
